<compile_context>
chip_gen: v6e
topology: v6e:2x2x1
jax: 0.10.0
libtpu: 0.0.40
codegen_flags: <defaults>
</compile_context>

<pallas_src>
import jax
import jax.numpy as jnp
from jax.experimental import pallas as pl
from jax.experimental.pallas import tpu as pltpu

_LANE = 128
_SUBLANE = 8
_SMALL_PATH_VMEM_BYTES = 4 << 20  # below this, run everything in one grid step


def _round_up(n: int, m: int) -> int:
    return ((n + m - 1) // m) * m


def _vmem_limit_bytes() -> int:
    """Per-chip VMEM budget: ~3/4 of physical, capped at 100 MiB.
    v5e/v6e (128 MiB phys) -> ~96-100 MiB; v7x (64 MiB phys) -> 48 MiB."""
    cap = 128 << 20
    try:
        cap = int(getattr(pltpu.get_tpu_info(), "vmem_capacity_bytes", cap))
    except Exception:
        cap = 64 << 20  # conservative (v7x-sized) fallback
    return int(min(cap * 3 // 4, 100 << 20))


def _pick_tile(dim_padded: int) -> int:
    # dim_padded is a multiple of 128.  256 matches the v6e/v7x MXU and keeps
    # the double-buffered working set comfortably inside v7x's 64 MiB VMEM.
    # TODO(synk): sweep tn/tk to 512 on v6e and add pl.Buffered(3) on the
    # weight spec for v5e (most DMA-exposed generation).
    for t in (256, 128):
        if dim_padded % t == 0:
            return t
    return dim_padded


# ---------------------------------------------------------------------------
# Kernels
# ---------------------------------------------------------------------------

def _fused_small_kernel(x_ref, wt_ref, b_ref, o_ref):
    """Single grid step: x (B,M,Kp) bf16, wt (B,Kp,Np) bf16, b (B,1,Np) f32."""
    # B is tiny and static -> trace-time unroll; one grid step for all blocks.
    for i in range(x_ref.shape[0]):
        acc = jnp.dot(x_ref[i], wt_ref[i], preferred_element_type=jnp.float32)
        o_ref[i] = (acc + b_ref[i]).astype(o_ref.dtype)


def _tiled_linear_kernel(x_ref, wt_ref, b_ref, o_ref, acc_ref):
    """Grid (B, N//tn, K//tk), K innermost.  Bias folded into the k==0 init."""
    k = pl.program_id(2)

    @pl.when(k == 0)
    def _init():
        acc_ref[...] = jnp.broadcast_to(
            b_ref[...].astype(jnp.float32), acc_ref.shape)

    acc_ref[...] += jnp.dot(x_ref[...], wt_ref[...],
                            preferred_element_type=jnp.float32)

    @pl.when(k == pl.num_programs(2) - 1)
    def _store():
        o_ref[...] = acc_ref[...].astype(o_ref.dtype)


# ---------------------------------------------------------------------------
# pallas_call wrappers
# ---------------------------------------------------------------------------

def _run_small(x, wt, b2, out_dtype):
    B, Mp, Kp = x.shape
    Np = wt.shape[2]
    flops = 2 * B * Mp * Kp * Np
    bytes_accessed = (x.size * x.dtype.itemsize
                      + wt.size * wt.dtype.itemsize
                      + b2.size * b2.dtype.itemsize
                      + B * Mp * Np * jnp.dtype(out_dtype).itemsize)
    return pl.pallas_call(
        _fused_small_kernel,
        out_shape=jax.ShapeDtypeStruct((B, Mp, Np), out_dtype),
        grid_spec=pltpu.PrefetchScalarGridSpec(
            num_scalar_prefetch=0,
            grid=(1,),  # one grid step total; whole working set fits VMEM
            in_specs=[
                pl.BlockSpec((B, Mp, Kp), lambda i: (0, 0, 0)),
                pl.BlockSpec((B, Kp, Np), lambda i: (0, 0, 0)),
                pl.BlockSpec((B, 1, Np), lambda i: (0, 0, 0)),
            ],
            out_specs=pl.BlockSpec((B, Mp, Np), lambda i: (0, 0, 0)),
        ),
        compiler_params=pltpu.CompilerParams(
            dimension_semantics=("arbitrary",)),
        cost_estimate=pl.CostEstimate(
            flops=flops, transcendentals=0, bytes_accessed=bytes_accessed),
    )(x, wt, b2)


def _run_tiled(x, wt, b2, out_dtype):
    B, Mp, Kp = x.shape
    Np = wt.shape[2]
    tk = _pick_tile(Kp)
    tn = _pick_tile(Np)
    kt = Kp // tk
    nt = Np // tn
    # TODO(synk): also tile M (extra parallel grid axis) once M gets large;
    # that also gives v7x's 2 TensorCores an even split when B is odd.
    flops = 2 * B * Mp * Kp * Np
    bytes_accessed = (B * Mp * Kp * x.dtype.itemsize * nt  # x re-read per N tile
                      + wt.size * wt.dtype.itemsize
                      + b2.size * b2.dtype.itemsize
                      + B * Mp * Np * jnp.dtype(out_dtype).itemsize)
    return pl.pallas_call(
        _tiled_linear_kernel,
        out_shape=jax.ShapeDtypeStruct((B, Mp, Np), out_dtype),
        grid_spec=pltpu.PrefetchScalarGridSpec(
            num_scalar_prefetch=0,
            grid=(B, nt, kt),  # K last: accumulator lives across it
            in_specs=[
                pl.BlockSpec((None, Mp, tk), lambda b, n, k: (b, 0, k)),
                pl.BlockSpec((None, tk, tn), lambda b, n, k: (b, k, n)),
                pl.BlockSpec((None, 1, tn), lambda b, n, k: (b, 0, n)),
            ],
            out_specs=pl.BlockSpec((None, Mp, tn), lambda b, n, k: (b, 0, n)),
            scratch_shapes=[pltpu.VMEM((Mp, tn), jnp.float32)],
        ),
        compiler_params=pltpu.CompilerParams(
            dimension_semantics=("parallel", "parallel", "arbitrary"),
            vmem_limit_bytes=_vmem_limit_bytes()),
        cost_estimate=pl.CostEstimate(
            flops=flops, transcendentals=0, bytes_accessed=bytes_accessed),
    )(x, wt, b2)


# ---------------------------------------------------------------------------
# Module wrapper
# ---------------------------------------------------------------------------

class ElementwiseModuleListPallas:
    """JAX/Pallas equivalent of ElementwiseModuleList([Linear(h, h), ...])."""

    def __init__(self, params, compute_dtype=jnp.bfloat16, force_tiled=False):
        # params: list of (weight (N, K), bias (N,)) per block.
        ws = [w for w, _ in params]
        bs = [b for _, b in params]
        N, K = ws[0].shape
        B = len(params)
        Kp = _round_up(K, _LANE)
        Np = _round_up(N, _LANE)

        # Pre-transpose + cast + lane-pad ONCE at init (not in the hot path).
        wt = jnp.stack([w.T for w in ws]).astype(compute_dtype)      # (B, K, N)
        if Kp != K or Np != N:                                        # guarded pad
            wt = jnp.pad(wt, ((0, 0), (0, Kp - K), (0, Np - N)))
        b2 = jnp.stack([b.reshape(1, N) for b in bs]).astype(jnp.float32)
        if Np != N:
            b2 = jnp.pad(b2, ((0, 0), (0, 0), (0, Np - N)))

        self.num_blocks = B
        self.wt_stacked = wt
        self.b_stacked = b2
        out_dtype = jnp.float32

        def _fwd(wt_s, b_s, *xs):
            # stack + cast + pad + kernel + slice + unbind: ONE jit dispatch.
            x = jnp.stack(xs).astype(compute_dtype)                  # (B, M, K)
            M = x.shape[1]
            Mp = _round_up(M, _SUBLANE)
            if Mp != M or Kp != K:
                x = jnp.pad(x, ((0, 0), (0, Mp - M), (0, Kp - K)))

            small_bytes = (x.size * x.dtype.itemsize
                           + wt_s.size * wt_s.dtype.itemsize
                           + b_s.size * b_s.dtype.itemsize
                           + B * Mp * Np * jnp.dtype(out_dtype).itemsize)
            if force_tiled or small_bytes > _SMALL_PATH_VMEM_BYTES:
                y = _run_tiled(x, wt_s, b_s, out_dtype)
            else:
                y = _run_small(x, wt_s, b_s, out_dtype)

            if Mp != M or Np != N:      # drop zero padding only when present
                y = y[:, :M, :N]
            return tuple(y[i] for i in range(B))

        self._fwd = jax.jit(_fwd)

    def __call__(self, inputs):
        # Mirrors: while i < len(input): collector.append(block[i](input[i]))
        assert len(inputs) == self.num_blocks
        # TODO(synk): heterogeneous per-block (M, K) shapes would need a
        # per-block fallback path; here all inputs share one shape.
        assert all(x.shape == inputs[0].shape for x in inputs)
        return list(self._fwd(self.wt_stacked, self.b_stacked, *inputs))


# ---------------------------------------------------------------------------
# Demo / self-test
# ---------------------------------------------------------------------------

def _make_params(num_blocks, hidden, key):
    params = []
    for _ in range(num_blocks):
        key, kw, kb = jax.random.split(key, 3)
        w = jax.random.normal(kw, (hidden, hidden), jnp.float32) * 0.05
        b = jax.random.normal(kb, (hidden,), jnp.float32) * 0.01
        params.append((w, b))
    return params, key


def _check(outs, inputs, params, tag):
    # Reference mirrors the kernel numerics: bf16-rounded x/W, f32 accumulation.
    for i, (x, (w, b)) in enumerate(zip(inputs, params)):
        xb = x.astype(jnp.bfloat16).astype(jnp.float32)
        wb = w.astype(jnp.bfloat16).astype(jnp.float32)
        ref = xb @ wb.T + b
        assert outs[i].shape == ref.shape, f"{tag} block {i}: shape mismatch"
        assert jnp.allclose(outs[i], ref, atol=2e-3, rtol=2e-3), \
            f"{tag} block {i}: value mismatch"


if __name__ == "__main__":
    key = jax.random.PRNGKey(0)

    # --- 1) Demo size (batch=2, seq=8, hidden=32): single-step fused path. ---
    num_blocks, batch, seq, hidden = 3, 2, 8, 32
    M = batch * seq  # nn.Linear flattens leading dims
    params, key = _make_params(num_blocks, hidden, key)
    inputs = []
    for _ in range(num_blocks):
        key, kx = jax.random.split(key)
        inputs.append(jax.random.normal(kx, (M, hidden), jnp.float32))
    model = ElementwiseModuleListPallas(params)
    outs = [jax.block_until_ready(o) for o in model(inputs)]
    _check(outs, inputs, params, "small")

    # --- 2) Also exercise the K/N-tiled accumulator path (still small). ---
    num_blocks2, M2, hidden2 = 2, 128, 256
    params2, key = _make_params(num_blocks2, hidden2, key)
    inputs2 = []
    for _ in range(num_blocks2):
        key, kx = jax.random.split(key)
        inputs2.append(jax.random.normal(kx, (M2, hidden2), jnp.float32))
    model2 = ElementwiseModuleListPallas(params2, force_tiled=True)
    outs2 = [jax.block_until_ready(o) for o in model2(inputs2)]
    _check(outs2, inputs2, params2, "tiled")

    print("KERNEL_OK")
</pallas_src>

<mosaic_0001>
module attributes {stable_mosaic.version = 11 : i64} {
  func.func @_fused_small_kernel(%arg0: i32, %arg1: memref<3x16x128xbf16, #tpu.memory_space<vmem>>, %arg2: memref<3x128x128xbf16, #tpu.memory_space<vmem>>, %arg3: memref<3x1x128xf32, #tpu.memory_space<vmem>>, %arg4: memref<3x16x128xf32, #tpu.memory_space<vmem>>) attributes {dimension_semantics = [#tpu.dimension_semantics<arbitrary>], iteration_bounds = array<i64: 1>, scalar_prefetch = 0 : i64, scratch_operands = 0 : i64, tpu.core_type = #tpu.core_type<tc>, window_params = [{pipeline_mode = #tpu.pipeline_mode<synchronous>, transform_indices = @transform_0, window_bounds = array<i64: 3, 16, 128>}, {pipeline_mode = #tpu.pipeline_mode<synchronous>, transform_indices = @transform_1, window_bounds = array<i64: 3, 128, 128>}, {pipeline_mode = #tpu.pipeline_mode<synchronous>, transform_indices = @transform_2, window_bounds = array<i64: 3, 1, 128>}, {pipeline_mode = #tpu.pipeline_mode<synchronous>, transform_indices = @transform_3, window_bounds = array<i64: 3, 16, 128>}]} {
    %c0 = arith.constant 0 : index
    %c0_0 = arith.constant 0 : index
    %c0_1 = arith.constant 0 : index
    %0 = vector.load %arg1[%c0, %c0_0, %c0_1] : memref<3x16x128xbf16, #tpu.memory_space<vmem>>, vector<1x16x128xbf16>
    %1 = vector.shape_cast %0 : vector<1x16x128xbf16> to vector<16x128xbf16>
    %c0_2 = arith.constant 0 : index
    %c0_3 = arith.constant 0 : index
    %c0_4 = arith.constant 0 : index
    %2 = vector.load %arg2[%c0_2, %c0_3, %c0_4] : memref<3x128x128xbf16, #tpu.memory_space<vmem>>, vector<1x128x128xbf16>
    %3 = vector.shape_cast %2 : vector<1x128x128xbf16> to vector<128x128xbf16>
    %cst = arith.constant dense<0.000000e+00> : vector<16x128xf32>
    %4 = tpu.matmul %1, %3, %cst {dimension_numbers = #tpu.dot_dimension_numbers<[1], [0], [0], [1], [0, 0, 1, 1], [], []>} : vector<16x128xbf16>, vector<128x128xbf16>, vector<16x128xf32> -> vector<16x128xf32>
    %c0_5 = arith.constant 0 : index
    %c0_6 = arith.constant 0 : index
    %c0_7 = arith.constant 0 : index
    %5 = vector.load %arg3[%c0_5, %c0_6, %c0_7] : memref<3x1x128xf32, #tpu.memory_space<vmem>>, vector<1x1x128xf32>
    %6 = vector.shape_cast %5 : vector<1x1x128xf32> to vector<1x128xf32>
    %7 = vector.broadcast %6 : vector<1x128xf32> to vector<16x128xf32>
    %8 = arith.addf %4, %7 : vector<16x128xf32>
    %c0_8 = arith.constant 0 : index
    %c0_9 = arith.constant 0 : index
    %c0_10 = arith.constant 0 : index
    %9 = vector.load %arg4[%c0_8, %c0_9, %c0_10] : memref<3x16x128xf32, #tpu.memory_space<vmem>>, vector<1x16x128xf32>
    %10 = vector.shape_cast %9 : vector<1x16x128xf32> to vector<16x128xf32>
    %11 = vector.shape_cast %8 : vector<16x128xf32> to vector<1x16x128xf32>
    tpu.vector_store %arg4[%c0_8, %c0_9, %c0_10], %11 {strides = array<i32>} : memref<3x16x128xf32, #tpu.memory_space<vmem>>, vector<1x16x128xf32>,
    %c1 = arith.constant 1 : index
    %c0_11 = arith.constant 0 : index
    %c0_12 = arith.constant 0 : index
    %12 = vector.load %arg1[%c1, %c0_11, %c0_12] : memref<3x16x128xbf16, #tpu.memory_space<vmem>>, vector<1x16x128xbf16>
    %13 = vector.shape_cast %12 : vector<1x16x128xbf16> to vector<16x128xbf16>
    %c1_13 = arith.constant 1 : index
    %c0_14 = arith.constant 0 : index
    %c0_15 = arith.constant 0 : index
    %14 = vector.load %arg2[%c1_13, %c0_14, %c0_15] : memref<3x128x128xbf16, #tpu.memory_space<vmem>>, vector<1x128x128xbf16>
    %15 = vector.shape_cast %14 : vector<1x128x128xbf16> to vector<128x128xbf16>
    %cst_16 = arith.constant dense<0.000000e+00> : vector<16x128xf32>
    %16 = tpu.matmul %13, %15, %cst_16 {dimension_numbers = #tpu.dot_dimension_numbers<[1], [0], [0], [1], [0, 0, 1, 1], [], []>} : vector<16x128xbf16>, vector<128x128xbf16>, vector<16x128xf32> -> vector<16x128xf32>
    %c1_17 = arith.constant 1 : index
    %c0_18 = arith.constant 0 : index
    %c0_19 = arith.constant 0 : index
    %17 = vector.load %arg3[%c1_17, %c0_18, %c0_19] : memref<3x1x128xf32, #tpu.memory_space<vmem>>, vector<1x1x128xf32>
    %18 = vector.shape_cast %17 : vector<1x1x128xf32> to vector<1x128xf32>
    %19 = vector.broadcast %18 : vector<1x128xf32> to vector<16x128xf32>
    %20 = arith.addf %16, %19 : vector<16x128xf32>
    %c1_20 = arith.constant 1 : index
    %c0_21 = arith.constant 0 : index
    %c0_22 = arith.constant 0 : index
    %21 = vector.load %arg4[%c1_20, %c0_21, %c0_22] : memref<3x16x128xf32, #tpu.memory_space<vmem>>, vector<1x16x128xf32>
    %22 = vector.shape_cast %21 : vector<1x16x128xf32> to vector<16x128xf32>
    %23 = vector.shape_cast %20 : vector<16x128xf32> to vector<1x16x128xf32>
    tpu.vector_store %arg4[%c1_20, %c0_21, %c0_22], %23 {strides = array<i32>} : memref<3x16x128xf32, #tpu.memory_space<vmem>>, vector<1x16x128xf32>,
    %c2 = arith.constant 2 : index
    %c0_23 = arith.constant 0 : index
    %c0_24 = arith.constant 0 : index
    %24 = vector.load %arg1[%c2, %c0_23, %c0_24] : memref<3x16x128xbf16, #tpu.memory_space<vmem>>, vector<1x16x128xbf16>
    %25 = vector.shape_cast %24 : vector<1x16x128xbf16> to vector<16x128xbf16>
    %c2_25 = arith.constant 2 : index
    %c0_26 = arith.constant 0 : index
    %c0_27 = arith.constant 0 : index
    %26 = vector.load %arg2[%c2_25, %c0_26, %c0_27] : memref<3x128x128xbf16, #tpu.memory_space<vmem>>, vector<1x128x128xbf16>
    %27 = vector.shape_cast %26 : vector<1x128x128xbf16> to vector<128x128xbf16>
    %cst_28 = arith.constant dense<0.000000e+00> : vector<16x128xf32>
    %28 = tpu.matmul %25, %27, %cst_28 {dimension_numbers = #tpu.dot_dimension_numbers<[1], [0], [0], [1], [0, 0, 1, 1], [], []>} : vector<16x128xbf16>, vector<128x128xbf16>, vector<16x128xf32> -> vector<16x128xf32>
    %c2_29 = arith.constant 2 : index
    %c0_30 = arith.constant 0 : index
    %c0_31 = arith.constant 0 : index
    %29 = vector.load %arg3[%c2_29, %c0_30, %c0_31] : memref<3x1x128xf32, #tpu.memory_space<vmem>>, vector<1x1x128xf32>
    %30 = vector.shape_cast %29 : vector<1x1x128xf32> to vector<1x128xf32>
    %31 = vector.broadcast %30 : vector<1x128xf32> to vector<16x128xf32>
    %32 = arith.addf %28, %31 : vector<16x128xf32>
    %c2_32 = arith.constant 2 : index
    %c0_33 = arith.constant 0 : index
    %c0_34 = arith.constant 0 : index
    %33 = vector.load %arg4[%c2_32, %c0_33, %c0_34] : memref<3x16x128xf32, #tpu.memory_space<vmem>>, vector<1x16x128xf32>
    %34 = vector.shape_cast %33 : vector<1x16x128xf32> to vector<16x128xf32>
    %35 = vector.shape_cast %32 : vector<16x128xf32> to vector<1x16x128xf32>
    tpu.vector_store %arg4[%c2_32, %c0_33, %c0_34], %35 {strides = array<i32>} : memref<3x16x128xf32, #tpu.memory_space<vmem>>, vector<1x16x128xf32>,
    return
  }
  func.func @transform_0(%arg0: i32) -> (i32, i32, i32) {
    %c0_i32 = arith.constant 0 : i32
    %c0_i32_0 = arith.constant 0 : i32
    %c0_i32_1 = arith.constant 0 : i32
    %c0_i32_2 = arith.constant 0 : i32
    return %c0_i32, %c0_i32_0, %c0_i32_1 : i32, i32, i32
  }
  func.func @transform_1(%arg0: i32) -> (i32, i32, i32) {
    %c0_i32 = arith.constant 0 : i32
    %c0_i32_0 = arith.constant 0 : i32
    %c0_i32_1 = arith.constant 0 : i32
    %c0_i32_2 = arith.constant 0 : i32
    return %c0_i32, %c0_i32_0, %c0_i32_1 : i32, i32, i32
  }
  func.func @transform_2(%arg0: i32) -> (i32, i32, i32) {
    %c0_i32 = arith.constant 0 : i32
    %c0_i32_0 = arith.constant 0 : i32
    %c0_i32_1 = arith.constant 0 : i32
    %c0_i32_2 = arith.constant 0 : i32
    return %c0_i32, %c0_i32_0, %c0_i32_1 : i32, i32, i32
  }
  func.func @transform_3(%arg0: i32) -> (i32, i32, i32) {
    %c0_i32 = arith.constant 0 : i32
    %c0_i32_0 = arith.constant 0 : i32
    %c0_i32_1 = arith.constant 0 : i32
    %c0_i32_2 = arith.constant 0 : i32
    return %c0_i32, %c0_i32_0, %c0_i32_1 : i32, i32, i32
  }
}

</mosaic_0001>

<llo_original>
// kernel: _fwd.1
$region0: #{_fwd.1}
  #allocation0 [shape = 'u32[]', space=smem, size = 0x4, offset = 0x4, fixed_abs, tag = 'smem constant byte address 0x4 - core index']
  #allocation1 [shape = 'u32[144,128]{1,0:T(1,128)}', space=vmem, size = 0x12000, scoped, tag = 'internal scratch']
  %s0 = inlined_call_operand.vmem [shape: bf16[3,16,128], index: 0, kind: input, shape index: {}]
  %s1 = inlined_call_operand.hbm [shape: bf16[3,128,128], index: 1, kind: input, shape index: {}]
  %s2 = inlined_call_operand.vmem [shape: f32[3,1,128], index: 2, kind: input, shape index: {}]
  %s3 = inlined_call_operand.vmem [shape: f32[3,16,128], index: 3, kind: output, shape index: {}]
  %s4 = sld [smem:[#allocation0]]
  $region26: #{_fwd.1} parent=0
    _
  %s6 = ssub.s32 1, %s4
  %s7 = scalar_select 0, %s6, %s4
  $region1: #{_fwd.1} parent=0
    #allocation2 [shape = 'u8[98304]{0}', space=vmem, size = 0x18000, scoped, tag = 'input window, operand 1, single buffered']
    #allocation3 [shape = 's32[1]{0}', space=sflag, size = 0x4, scoped, tag = 'scoped memory for _fwd.1']
    %8 = vsyncpa [#allocation3], 0
    // Predicated region
    $region2: #{_fwd.1} parent=1 // pred_check
      _
    $region3: #{_fwd.1} parent=1 // pred_check_branch
      %10 = sbr.rel (0) target = $region5
    $region4: #{_fwd.1} parent=1 // pred_region
      _
    $region5: #{_fwd.1} parent=1 // pred_fallthru
      _
    // Predicated region
    $region6: #{_fwd.1} parent=1 // pred_check
      _
    $region7: #{_fwd.1} parent=1 // pred_check_branch
      %12 = sbr.rel (0) target = $region9
    $region8: #{_fwd.1} parent=1 // pred_region
      %s14 = ssub.s32 3072, 3072
      %15 = vsyncadd [#allocation3], %s14
      %s16 = sshll.u32 [#allocation2], 4
      %s17 = int_to_ptr.vmem [resolvable:$true] %s16
      %22 = dma.hbm_to_vmem [thread:$0]  %s1, 3072, %s17, [#allocation3], 64, 64, 4
    $region9: #{_fwd.1} parent=1 // pred_fallthru
      _
    // Predicated region
    $region10: #{_fwd.1} parent=1 // pred_check
      _
    $region11: #{_fwd.1} parent=1 // pred_check_branch
      %24 = sbr.rel (0) target = $region13
    $region12: #{_fwd.1} parent=1 // pred_region
      _
    $region13: #{_fwd.1} parent=1 // pred_fallthru
      _
    // Predicated region
    $region14: #{_fwd.1} parent=1 // pred_check
      _
    $region15: #{_fwd.1} parent=1 // pred_check_branch
      %26 = sbr.rel (0) target = $region17
    $region16: #{_fwd.1} parent=1 // pred_region
      %27 = dma.done [#allocation3], 3072
    $region17: #{_fwd.1} parent=1 // pred_fallthru
      _
    %v29 = vld [vmem:[%s0] sm:$0xf]
    %v30 = vld [vmem:[%s0 + $0x4] sm:$0xf]
    %v31 = vld [vmem:[#allocation2] sm:$0xf]
    %v32 = vld [vmem:[#allocation2 + $0x4] sm:$0xf]
    %v33 = vld [vmem:[#allocation2 + $0x8] sm:$0xf]
    %v34 = vld [vmem:[#allocation2 + $0xc] sm:$0xf]
    %v35 = vld [vmem:[#allocation2 + $0x10] sm:$0xf]
    %v36 = vld [vmem:[#allocation2 + $0x14] sm:$0xf]
    %v37 = vld [vmem:[#allocation2 + $0x18] sm:$0xf]
    %v38 = vld [vmem:[#allocation2 + $0x1c] sm:$0xf]
    %v39 = vld [vmem:[#allocation2 + $0x20] sm:$0xf]
    %v40 = vld [vmem:[#allocation2 + $0x24] sm:$0xf]
    %v41 = vld [vmem:[#allocation2 + $0x28] sm:$0xf]
    %v42 = vld [vmem:[#allocation2 + $0x2c] sm:$0xf]
    %v43 = vld [vmem:[#allocation2 + $0x30] sm:$0xf]
    %v44 = vld [vmem:[#allocation2 + $0x34] sm:$0xf]
    %v45 = vld [vmem:[#allocation2 + $0x38] sm:$0xf]
    %v46 = vld [vmem:[#allocation2 + $0x3c] sm:$0xf]
    %v47 = vld [vmem:[%s2] sm:$0x1]
    %v49 = vlaneseq
    %v50 = vshrl.u32 %v49, 7
    %v51 = vsub.s32 0, %v50
    %v52 = vrot.slane %v47, %v51
    %v56 = vunpack.c.l.b16 %v29
    %v57 = vunpack.c.l.b16 %v30
    %v58 = vpack.c.b16 %v57, %v56
    %v76 = vunpack.c.l.b16 %v31
    %v77 = vunpack.c.l.b16 %v32
    %v78 = vunpack.c.l.b16 %v33
    %v79 = vunpack.c.l.b16 %v34
    %v80 = vunpack.c.l.b16 %v35
    %v81 = vunpack.c.l.b16 %v36
    %v82 = vunpack.c.l.b16 %v37
    %v83 = vunpack.c.l.b16 %v38
    %v84 = vunpack.c.l.b16 %v39
    %v85 = vunpack.c.l.b16 %v40
    %v86 = vunpack.c.l.b16 %v41
    %v87 = vunpack.c.l.b16 %v42
    %v88 = vunpack.c.l.b16 %v43
    %v89 = vunpack.c.l.b16 %v44
    %v90 = vunpack.c.l.b16 %v45
    %v91 = vunpack.c.l.b16 %v46
    %v92 = vpack.c.b16 %v77, %v76
    %v93 = vpack.c.b16 %v79, %v78
    %v94 = vpack.c.b16 %v81, %v80
    %v95 = vpack.c.b16 %v83, %v82
    %v96 = vpack.c.b16 %v85, %v84
    %v97 = vpack.c.b16 %v87, %v86
    %v98 = vpack.c.b16 %v89, %v88
    %v99 = vpack.c.b16 %v91, %v90
    %108 = vmatprep.subr.bf16.mxu0 0
    %109 = vmatpush1.bf16.msra.mxu0 %v99
    %110 = vmatprep.subr.bf16.mxu0 0
    %111 = vmatpush1.bf16.msra.mxu0 %v98
    %112 = vmatprep.subr.bf16.mxu0 0
    %113 = vmatpush1.bf16.msra.mxu0 %v97
    %114 = vmatprep.subr.bf16.mxu0 0
    %115 = vmatpush1.bf16.msra.mxu0 %v96
    %116 = vmatprep.subr.bf16.mxu0 0
    %117 = vmatpush1.bf16.msra.mxu0 %v95
    %118 = vmatprep.subr.bf16.mxu0 0
    %119 = vmatpush1.bf16.msra.mxu0 %v94
    %120 = vmatprep.subr.bf16.mxu0 0
    %121 = vmatpush1.bf16.msra.mxu0 %v93
    %122 = vmatprep.subr.bf16.mxu0 0
    %123 = vmatpush1.bf16.msra.mxu0 %v92
    %124 = vmatprep.subr.bf16.mxu0 0
    %125 = vmatpush2.bf16.msra.mxu0 0
    %126 = vmatprep.subr.bf16.mxu0 0
    %127 = vmatpush2.bf16.msra.mxu0 0
    %128 = vmatprep.subr.bf16.mxu0 0
    %129 = vmatpush2.bf16.msra.mxu0 0
    %130 = vmatprep.subr.bf16.mxu0 0
    %131 = vmatpush2.bf16.msra.mxu0 0
    %132 = vmatprep.subr.bf16.mxu0 0
    %133 = vmatpush2.bf16.msra.mxu0 0
    %134 = vmatprep.subr.bf16.mxu0 0
    %135 = vmatpush2.bf16.msra.mxu0 0
    %136 = vmatprep.subr.bf16.mxu0 0
    %137 = vmatpush2.bf16.msra.mxu0 0
    %138 = vmatprep.subr.bf16.mxu0 0
    %139 = vmatpush2.bf16.msra.mxu0 0
    %140 = vmatprep.mubr.bf16.mxu0 0
    %141 = vmatmul.mubr.bf16.gmra.mxu0 %v58
    %v142 = vpop.f32.mrf.mxu0
    %v143 = vadd.f32 %v52, %v142
    %v144 = vpop.f32.mrf.mxu0
    %v145 = vpop.f32.mrf.mxu0
    %v146 = vadd.f32 %v52, %v145
    %v147 = vpop.f32.mrf.mxu0
    %148 = vdwg.mxu0
    %149 = vst [vmem:[%s3] sm:$0xff] %v143
    %150 = vst [vmem:[%s3 + $0x8] sm:$0xff] %v146
    %s151 = scalar_lea.vmem %s0, 8
    %v152 = vld [vmem:[%s151] sm:$0xf]
    %v153 = vld [vmem:[%s151 + $0x4] sm:$0xf]
    %s154 = scalar_lea.vmem [#allocation2], 64
    %v155 = vld [vmem:[%s154] sm:$0xf]
    %v156 = vld [vmem:[%s154 + $0x4] sm:$0xf]
    %v157 = vld [vmem:[%s154 + $0x8] sm:$0xf]
    %v158 = vld [vmem:[%s154 + $0xc] sm:$0xf]
    %v159 = vld [vmem:[%s154 + $0x10] sm:$0xf]
    %v160 = vld [vmem:[%s154 + $0x14] sm:$0xf]
    %v161 = vld [vmem:[%s154 + $0x18] sm:$0xf]
    %v162 = vld [vmem:[%s154 + $0x1c] sm:$0xf]
    %v163 = vld [vmem:[%s154 + $0x20] sm:$0xf]
    %v164 = vld [vmem:[%s154 + $0x24] sm:$0xf]
    %v165 = vld [vmem:[%s154 + $0x28] sm:$0xf]
    %v166 = vld [vmem:[%s154 + $0x2c] sm:$0xf]
    %v167 = vld [vmem:[%s154 + $0x30] sm:$0xf]
    %v168 = vld [vmem:[%s154 + $0x34] sm:$0xf]
    %v169 = vld [vmem:[%s154 + $0x38] sm:$0xf]
    %v170 = vld [vmem:[%s154 + $0x3c] sm:$0xf]
    %s171 = scalar_lea.vmem %s2, 1
    %v172 = vld [vmem:[%s171] sm:$0x1]
    %v174 = vlaneseq
    %v175 = vshrl.u32 %v174, 7
    %v176 = vsub.s32 0, %v175
    %v177 = vrot.slane %v172, %v176
    %v181 = vunpack.c.l.b16 %v152
    %v182 = vunpack.c.l.b16 %v153
    %v183 = vpack.c.b16 %v182, %v181
    %v201 = vunpack.c.l.b16 %v155
    %v202 = vunpack.c.l.b16 %v156
    %v203 = vunpack.c.l.b16 %v157
    %v204 = vunpack.c.l.b16 %v158
    %v205 = vunpack.c.l.b16 %v159
    %v206 = vunpack.c.l.b16 %v160
    %v207 = vunpack.c.l.b16 %v161
    %v208 = vunpack.c.l.b16 %v162
    %v209 = vunpack.c.l.b16 %v163
    %v210 = vunpack.c.l.b16 %v164
    %v211 = vunpack.c.l.b16 %v165
    %v212 = vunpack.c.l.b16 %v166
    %v213 = vunpack.c.l.b16 %v167
    %v214 = vunpack.c.l.b16 %v168
    %v215 = vunpack.c.l.b16 %v169
    %v216 = vunpack.c.l.b16 %v170
    %v217 = vpack.c.b16 %v202, %v201
    %v218 = vpack.c.b16 %v204, %v203
    %v219 = vpack.c.b16 %v206, %v205
    %v220 = vpack.c.b16 %v208, %v207
    %v221 = vpack.c.b16 %v210, %v209
    %v222 = vpack.c.b16 %v212, %v211
    %v223 = vpack.c.b16 %v214, %v213
    %v224 = vpack.c.b16 %v216, %v215
    %233 = vmatprep.subr.bf16.mxu0 0
    %234 = vmatpush1.bf16.msra.mxu0 %v224
    %235 = vmatprep.subr.bf16.mxu0 0
    %236 = vmatpush1.bf16.msra.mxu0 %v223
    %237 = vmatprep.subr.bf16.mxu0 0
    %238 = vmatpush1.bf16.msra.mxu0 %v222
    %239 = vmatprep.subr.bf16.mxu0 0
    %240 = vmatpush1.bf16.msra.mxu0 %v221
    %241 = vmatprep.subr.bf16.mxu0 0
    %242 = vmatpush1.bf16.msra.mxu0 %v220
    %243 = vmatprep.subr.bf16.mxu0 0
    %244 = vmatpush1.bf16.msra.mxu0 %v219
    %245 = vmatprep.subr.bf16.mxu0 0
    %246 = vmatpush1.bf16.msra.mxu0 %v218
    %247 = vmatprep.subr.bf16.mxu0 0
    %248 = vmatpush1.bf16.msra.mxu0 %v217
    %249 = vmatprep.subr.bf16.mxu0 0
    %250 = vmatpush2.bf16.msra.mxu0 0
    %251 = vmatprep.subr.bf16.mxu0 0
    %252 = vmatpush2.bf16.msra.mxu0 0
    %253 = vmatprep.subr.bf16.mxu0 0
    %254 = vmatpush2.bf16.msra.mxu0 0
    %255 = vmatprep.subr.bf16.mxu0 0
    %256 = vmatpush2.bf16.msra.mxu0 0
    %257 = vmatprep.subr.bf16.mxu0 0
    %258 = vmatpush2.bf16.msra.mxu0 0
    %259 = vmatprep.subr.bf16.mxu0 0
    %260 = vmatpush2.bf16.msra.mxu0 0
    %261 = vmatprep.subr.bf16.mxu0 0
    %262 = vmatpush2.bf16.msra.mxu0 0
    %263 = vmatprep.subr.bf16.mxu0 0
    %264 = vmatpush2.bf16.msra.mxu0 0
    %265 = vmatprep.mubr.bf16.mxu0 0
    %266 = vmatmul.mubr.bf16.gmra.mxu0 %v183
    %v267 = vpop.f32.mrf.mxu0
    %v268 = vadd.f32 %v177, %v267
    %v269 = vpop.f32.mrf.mxu0
    %v270 = vpop.f32.mrf.mxu0
    %v271 = vadd.f32 %v177, %v270
    %v272 = vpop.f32.mrf.mxu0
    %273 = vdwg.mxu0
    %s274 = scalar_lea.vmem %s3, 16
    %275 = vst [vmem:[%s274] sm:$0xff] %v268
    %276 = vst [vmem:[%s274 + $0x8] sm:$0xff] %v271
    %s277 = scalar_lea.vmem %s0, 16
    %v278 = vld [vmem:[%s277] sm:$0xf]
    %v279 = vld [vmem:[%s277 + $0x4] sm:$0xf]
    %s280 = scalar_lea.vmem [#allocation2], 128
    %v281 = vld [vmem:[%s280] sm:$0xf]
    %v282 = vld [vmem:[%s280 + $0x4] sm:$0xf]
    %v283 = vld [vmem:[%s280 + $0x8] sm:$0xf]
    %v284 = vld [vmem:[%s280 + $0xc] sm:$0xf]
    %v285 = vld [vmem:[%s280 + $0x10] sm:$0xf]
    %v286 = vld [vmem:[%s280 + $0x14] sm:$0xf]
    %v287 = vld [vmem:[%s280 + $0x18] sm:$0xf]
    %v288 = vld [vmem:[%s280 + $0x1c] sm:$0xf]
    %v289 = vld [vmem:[%s280 + $0x20] sm:$0xf]
    %v290 = vld [vmem:[%s280 + $0x24] sm:$0xf]
    %v291 = vld [vmem:[%s280 + $0x28] sm:$0xf]
    %v292 = vld [vmem:[%s280 + $0x2c] sm:$0xf]
    %v293 = vld [vmem:[%s280 + $0x30] sm:$0xf]
    %v294 = vld [vmem:[%s280 + $0x34] sm:$0xf]
    %v295 = vld [vmem:[%s280 + $0x38] sm:$0xf]
    %v296 = vld [vmem:[%s280 + $0x3c] sm:$0xf]
    %s297 = scalar_lea.vmem %s2, 2
    %v298 = vld [vmem:[%s297] sm:$0x1]
    %v300 = vlaneseq
    %v301 = vshrl.u32 %v300, 7
    %v302 = vsub.s32 0, %v301
    %v303 = vrot.slane %v298, %v302
    %v307 = vunpack.c.l.b16 %v278
    %v308 = vunpack.c.l.b16 %v279
    %v309 = vpack.c.b16 %v308, %v307
    %v327 = vunpack.c.l.b16 %v281
    %v328 = vunpack.c.l.b16 %v282
    %v329 = vunpack.c.l.b16 %v283
    %v330 = vunpack.c.l.b16 %v284
    %v331 = vunpack.c.l.b16 %v285
    %v332 = vunpack.c.l.b16 %v286
    %v333 = vunpack.c.l.b16 %v287
    %v334 = vunpack.c.l.b16 %v288
    %v335 = vunpack.c.l.b16 %v289
    %v336 = vunpack.c.l.b16 %v290
    %v337 = vunpack.c.l.b16 %v291
    %v338 = vunpack.c.l.b16 %v292
    %v339 = vunpack.c.l.b16 %v293
    %v340 = vunpack.c.l.b16 %v294
    %v341 = vunpack.c.l.b16 %v295
    %v342 = vunpack.c.l.b16 %v296
    %v343 = vpack.c.b16 %v328, %v327
    %v344 = vpack.c.b16 %v330, %v329
    %v345 = vpack.c.b16 %v332, %v331
    %v346 = vpack.c.b16 %v334, %v333
    %v347 = vpack.c.b16 %v336, %v335
    %v348 = vpack.c.b16 %v338, %v337
    %v349 = vpack.c.b16 %v340, %v339
    %v350 = vpack.c.b16 %v342, %v341
    %359 = vmatprep.subr.bf16.mxu0 0
    %360 = vmatpush1.bf16.msra.mxu0 %v350
    %361 = vmatprep.subr.bf16.mxu0 0
    %362 = vmatpush1.bf16.msra.mxu0 %v349
    %363 = vmatprep.subr.bf16.mxu0 0
    %364 = vmatpush1.bf16.msra.mxu0 %v348
    %365 = vmatprep.subr.bf16.mxu0 0
    %366 = vmatpush1.bf16.msra.mxu0 %v347
    %367 = vmatprep.subr.bf16.mxu0 0
    %368 = vmatpush1.bf16.msra.mxu0 %v346
    %369 = vmatprep.subr.bf16.mxu0 0
    %370 = vmatpush1.bf16.msra.mxu0 %v345
    %371 = vmatprep.subr.bf16.mxu0 0
    %372 = vmatpush1.bf16.msra.mxu0 %v344
    %373 = vmatprep.subr.bf16.mxu0 0
    %374 = vmatpush1.bf16.msra.mxu0 %v343
    %375 = vmatprep.subr.bf16.mxu0 0
    %376 = vmatpush2.bf16.msra.mxu0 0
    %377 = vmatprep.subr.bf16.mxu0 0
    %378 = vmatpush2.bf16.msra.mxu0 0
    %379 = vmatprep.subr.bf16.mxu0 0
    %380 = vmatpush2.bf16.msra.mxu0 0
    %381 = vmatprep.subr.bf16.mxu0 0
    %382 = vmatpush2.bf16.msra.mxu0 0
    %383 = vmatprep.subr.bf16.mxu0 0
    %384 = vmatpush2.bf16.msra.mxu0 0
    %385 = vmatprep.subr.bf16.mxu0 0
    %386 = vmatpush2.bf16.msra.mxu0 0
    %387 = vmatprep.subr.bf16.mxu0 0
    %388 = vmatpush2.bf16.msra.mxu0 0
    %389 = vmatprep.subr.bf16.mxu0 0
    %390 = vmatpush2.bf16.msra.mxu0 0
    %391 = vmatprep.mubr.bf16.mxu0 0
    %392 = vmatmul.mubr.bf16.gmra.mxu0 %v309
    %v393 = vpop.f32.mrf.mxu0
    %v394 = vadd.f32 %v303, %v393
    %v395 = vpop.f32.mrf.mxu0
    %v396 = vpop.f32.mrf.mxu0
    %v397 = vadd.f32 %v303, %v396
    %v398 = vpop.f32.mrf.mxu0
    %399 = vdwg.mxu0
    %s400 = scalar_lea.vmem %s3, 32
    %401 = vst [vmem:[%s400] sm:$0xff] %v394
    %402 = vst [vmem:[%s400 + $0x8] sm:$0xff] %v397
    // Predicated region
    $region18: #{_fwd.1} parent=1 // pred_check
      _
    $region19: #{_fwd.1} parent=1 // pred_check_branch
      %404 = sbr.rel (0) target = $region21
    $region20: #{_fwd.1} parent=1 // pred_region
      _
    $region21: #{_fwd.1} parent=1 // pred_fallthru
      _
    // Predicated region
    $region22: #{_fwd.1} parent=1 // pred_check
      _
    $region23: #{_fwd.1} parent=1 // pred_check_branch
      %406 = sbr.rel (0) target = $region25
    $region24: #{_fwd.1} parent=1 // pred_region
      _
    $region25: #{_fwd.1} parent=1 // pred_fallthru
      _
    %407 = vsyncpa [#allocation3], 1

</llo_original>
